<compile_context>
chip_gen: v5e
topology: v5e:2x2
jax: 0.10.0
libtpu: 0.0.40
codegen_flags: <defaults>
</compile_context>

<pallas_src>
import functools
import math

import jax
import jax.numpy as jnp
from jax.experimental import pallas as pl
from jax.experimental.pallas import tpu as pltpu


def _elementwise_loss(x, y, *, loss_type, gamma, alpha):
    """f32 element-wise loss matching the PyTorch module's forward."""
    if loss_type == "bce":
        # Numerically-stable BCE-with-logits (== torch.nn.BCEWithLogitsLoss):
        #   max(x,0) - x*y + log1p(exp(-|x|))
        return jnp.maximum(x, 0.0) - x * y + jnp.log1p(jnp.exp(-jnp.abs(x)))

    # Focal loss.  A single shared exp(-|x|) drives everything:
    #   log(sigmoid(x))   = -(relu(-x) + log1p(e))
    #   log(1-sigmoid(x)) = -(relu(x)  + log1p(e))
    #   sigmoid(x)        = where(x>=0, r, e*r),  r = 1/(1+e)   (EUP reciprocal)
    #   1 - sigmoid(x)    = where(x>=0, e*r, r)   (symmetry: no subtract)
    e = jnp.exp(-jnp.abs(x))
    sp = jnp.log1p(e)
    log_pt = -(jnp.maximum(-x, 0.0) + sp)          # log(sigmoid(x))
    log_1mpt = -(jnp.maximum(x, 0.0) + sp)         # log(1 - sigmoid(x))
    r = pl.reciprocal(1.0 + e, approx=True)        # EUP, off the VALU path
    er = e * r
    pos = x >= 0.0
    pt = jnp.where(pos, r, er)                     # sigmoid(x)
    one_m_pt = jnp.where(pos, er, r)               # 1 - sigmoid(x)
    if gamma == 2:                                 # default: pow -> multiplies
        w_pos = one_m_pt * one_m_pt
        w_neg = pt * pt
    else:
        w_pos = one_m_pt ** gamma
        w_neg = pt ** gamma
    # Pre-folded coefficients save a few VALU ops per element.
    c_pos = (-alpha) * y
    c_neg = (alpha - 1.0) * (1.0 - y)
    return c_pos * (w_pos * log_pt) + c_neg * (w_neg * log_1mpt)


def _loss_kernel(x_ref, y_ref, o_ref, *, loss_type, gamma, alpha,
                 num_rows, block_rows, need_mask):
    x = x_ref[...].astype(jnp.float32)
    y = y_ref[...].astype(jnp.float32)
    loss = _elementwise_loss(x, y, loss_type=loss_type, gamma=gamma, alpha=alpha)
    lanes = loss.shape[-1]

    def _store(v):
        # Reduce only across sublane groups of 8 rows (pure VPU vreg adds, no
        # per-step cross-lane scalar reduce, no serial accumulator chain).
        o_ref[...] = v.reshape(block_rows // 8, 8, lanes).sum(axis=0)

    if need_mask:
        i = pl.program_id(0)
        last = pl.num_programs(0) - 1

        @pl.when(i != last)
        def _():
            _store(loss)

        @pl.when(i == last)
        def _():
            # Only the ragged tail block pays for the iota + compare + select.
            row = i * block_rows + jax.lax.broadcasted_iota(jnp.int32, loss.shape, 0)
            _store(jnp.where(row < num_rows, loss, 0.0))
    else:
        _store(loss)


def _round_up(v, m):
    return ((v + m - 1) // m) * m


def classification_loss(logits, targets, loss_type="bce", *,
                        gamma=2.0, alpha=0.5, block_rows=None):
    """Pallas implementation of ClassificationLoss.forward (mean scalar loss)."""
    if loss_type not in ("bce", "focal"):
        # Matches the PyTorch module: any other loss_type returns 0.
        return jnp.float32(0.0)
    assert logits.shape == targets.shape

    total = int(math.prod(logits.shape))
    itemsize = jnp.dtype(logits.dtype).itemsize
    # Sublane-packing multiple for the input dtype (8 f32, 16 bf16, 32 int8).
    sub = max(8, 32 // max(1, itemsize))

    # ---- lane-dense 2-D view (no HBM copy) ---------------------------------
    lanes = None
    for cand in (512, 256, 128):
        if total % cand == 0:
            lanes = cand
            break
    if lanes is not None:
        rows = total // lanes
        x2 = logits.reshape(rows, lanes)           # row-major reshape: bitcast
        y2 = targets.reshape(rows, lanes)
    else:
        # Rare fallback (element count not a multiple of 128): keep the natural
        # [..., N] layout; the block's last dim equals the full array dim.
        # TODO(synk): if N is both huge and not a multiple of 128 this
        # full-row-width fallback could exceed the VMEM budget.
        n_last = logits.shape[-1] if logits.ndim else 1
        x2 = logits.reshape(-1, n_last)
        y2 = targets.reshape(-1, n_last)
        rows, lanes = x2.shape

    # ---- row-block sizing ---------------------------------------------------
    if block_rows is None:
        target_bytes = 2 << 20                     # ~2 MiB per input tile
        block_rows = target_bytes // max(1, lanes * itemsize)
    block_rows = max(sub, (block_rows // sub) * sub)
    # Cap at ~half the rows so the "parallel" axis has >= 2 steps (v7x megacore).
    block_rows = min(block_rows, max(sub, _round_up(pl.cdiv(rows, 2), sub)))

    num_blocks = pl.cdiv(rows, block_rows)
    # Ragged tail handled purely in-kernel; no jnp.pad, no extra HBM pass.
    need_mask = (rows % block_rows) != 0

    kernel = functools.partial(
        _loss_kernel, loss_type=loss_type, gamma=gamma, alpha=alpha,
        num_rows=rows, block_rows=block_rows, need_mask=need_mask)

    flops_per = 6 if loss_type == "bce" else 22
    trans_per = 2 if loss_type == "bce" else 3
    cost = pl.CostEstimate(
        flops=flops_per * total,
        transcendentals=trans_per * total,
        bytes_accessed=2 * total * itemsize + num_blocks * 8 * lanes * 4,
    )

    partials = pl.pallas_call(
        kernel,
        out_shape=jax.ShapeDtypeStruct((num_blocks * 8, lanes), jnp.float32),
        grid_spec=pltpu.PrefetchScalarGridSpec(
            num_scalar_prefetch=0,
            grid=(num_blocks,),
            in_specs=[
                pl.BlockSpec((block_rows, lanes), lambda i: (i, 0)),
                pl.BlockSpec((block_rows, lanes), lambda i: (i, 0)),
            ],
            out_specs=pl.BlockSpec((8, lanes), lambda i: (i, 0)),
        ),
        compiler_params=pltpu.CompilerParams(
            dimension_semantics=("parallel",),     # megacore-shardable on v7x
            vmem_limit_bytes=32 << 20,             # portable across 16/32 MiB defaults
        ),
        cost_estimate=cost,
    )(x2, y2)

    # Tiny epilogue: reduce the per-block (8, lanes) partials and take the mean.
    return jnp.sum(partials) / jnp.float32(total)


# ----------------------------- pure-JAX references -----------------------------

def _ref_bce(logits, targets):
    x = logits.astype(jnp.float32)
    y = targets.astype(jnp.float32)
    l = jnp.maximum(x, 0.0) - x * y + jnp.log1p(jnp.exp(-jnp.abs(x)))
    return jnp.mean(l)


def _ref_focal(logits, targets, gamma=2.0, alpha=0.5):
    # Literal PyTorch FocalLoss.forward formula.
    pt = jax.nn.sigmoid(logits.astype(jnp.float32))
    y = targets.astype(jnp.float32)
    l = (-alpha * (1 - pt) ** gamma * y * jnp.log(pt)
         - (1 - alpha) * pt ** gamma * (1 - y) * jnp.log(1 - pt))
    return jnp.mean(l)


if __name__ == "__main__":
    key = jax.random.PRNGKey(0)
    k1, k2, k3, k4 = jax.random.split(key, 4)

    # Multi-label classification: batch=16, num_classes=128 (lane-dense path).
    M, N = 16, 128
    logits = jax.random.normal(k1, (M, N), dtype=jnp.float32)
    targets = (jax.random.uniform(k2, (M, N)) > 0.5).astype(jnp.float32)

    # Default loss_type='bce' path.
    loss_bce = classification_loss(logits, targets, loss_type="bce")
    jax.block_until_ready(loss_bce)
    ref_bce = _ref_bce(logits, targets)
    assert jnp.allclose(loss_bce, ref_bce, rtol=1e-5, atol=1e-6), (loss_bce, ref_bce)

    # 'focal' path (relaxed tolerance: approximate EUP reciprocal + stable
    # softplus reformulation vs the naive torch formula).
    loss_focal = classification_loss(logits, targets, loss_type="focal")
    jax.block_until_ready(loss_focal)
    ref_focal = _ref_focal(logits, targets)
    assert jnp.allclose(loss_focal, ref_focal, rtol=2e-2, atol=1e-4), (loss_focal, ref_focal)

    # num_classes not a multiple of 128 and rows not a multiple of the block:
    # exercises the no-pad fallback layout + in-kernel ragged-row mask.
    M2, N2 = 50, 10
    logits2 = jax.random.normal(k3, (M2, N2), dtype=jnp.float32)
    targets2 = (jax.random.uniform(k4, (M2, N2)) > 0.5).astype(jnp.float32)
    l2 = classification_loss(logits2, targets2, loss_type="bce")
    jax.block_until_ready(l2)
    assert jnp.allclose(l2, _ref_bce(logits2, targets2), rtol=1e-5, atol=1e-6)
    l2f = classification_loss(logits2, targets2, loss_type="focal")
    jax.block_until_ready(l2f)
    assert jnp.allclose(l2f, _ref_focal(logits2, targets2), rtol=2e-2, atol=1e-4)

    # bf16 inputs: exercises the 16-row sublane-packing rounding.
    logits_b = logits.astype(jnp.bfloat16)
    targets_b = targets.astype(jnp.bfloat16)
    lb = classification_loss(logits_b, targets_b, loss_type="bce")
    jax.block_until_ready(lb)
    assert jnp.allclose(lb, _ref_bce(logits_b, targets_b), rtol=1e-4, atol=1e-5)

    # Any other loss_type returns 0, matching the module.
    assert float(classification_loss(logits, targets, loss_type="mse")) == 0.0

    print("KERNEL_OK")
</pallas_src>

<mosaic_0001>
module attributes {stable_mosaic.version = 11 : i64} {
  func.func @_loss_kernel(%arg0: i32, %arg1: memref<8x512xf32, #tpu.memory_space<vmem>>, %arg2: memref<8x512xf32, #tpu.memory_space<vmem>>, %arg3: memref<8x512xf32, #tpu.memory_space<vmem>>) attributes {dimension_semantics = [#tpu.dimension_semantics<parallel>], iteration_bounds = array<i64: 1>, scalar_prefetch = 0 : i64, scratch_operands = 0 : i64, tpu.core_type = #tpu.core_type<tc>, window_params = [{transform_indices = @transform_0, window_bounds = array<i64: 8, 512>}, {transform_indices = @transform_1, window_bounds = array<i64: 8, 512>}, {transform_indices = @transform_2, window_bounds = array<i64: 8, 512>}]} {
    %c0 = arith.constant 0 : index
    %c0_0 = arith.constant 0 : index
    %0 = vector.load %arg1[%c0, %c0_0] : memref<8x512xf32, #tpu.memory_space<vmem>>, vector<8x512xf32>
    %c0_1 = arith.constant 0 : index
    %c0_2 = arith.constant 0 : index
    %1 = vector.load %arg2[%c0_1, %c0_2] : memref<8x512xf32, #tpu.memory_space<vmem>>, vector<8x512xf32>
    %cst = arith.constant 0.000000e+00 : f32
    %2 = vector.broadcast %cst : f32 to vector<8x512xf32>
    %3 = arith.maximumf %0, %2 : vector<8x512xf32>
    %4 = arith.mulf %0, %1 : vector<8x512xf32>
    %5 = arith.subf %3, %4 : vector<8x512xf32>
    %6 = math.absf %0 : vector<8x512xf32>
    %cst_3 = arith.constant 0.000000e+00 : f32
    %7 = vector.broadcast %cst_3 : f32 to vector<8x512xf32>
    %8 = arith.subf %7, %6 : vector<8x512xf32>
    %9 = math.exp %8 : vector<8x512xf32>
    %10 = math.log1p %9 : vector<8x512xf32>
    %11 = arith.addf %5, %10 : vector<8x512xf32>
    %c0_i32 = arith.constant 0 : i32
    %12 = arith.cmpi ne, %arg0, %c0_i32 : i32
    %13 = arith.extui %12 : i1 to i32
    %c0_i32_4 = arith.constant 0 : i32
    %14 = arith.cmpi ne, %13, %c0_i32_4 : i32
    scf.if %14 {
      %18 = vector.shape_cast %11 : vector<8x512xf32> to vector<1x8x512xf32>
      %cst_7 = arith.constant dense<0.000000e+00> : vector<8x512xf32>
      %19 = vector.multi_reduction <add>, %18, %cst_7 [0] : vector<1x8x512xf32> to vector<8x512xf32>
      %c0_8 = arith.constant 0 : index
      %c0_9 = arith.constant 0 : index
      %20 = vector.load %arg3[%c0_8, %c0_9] : memref<8x512xf32, #tpu.memory_space<vmem>>, vector<8x512xf32>
      tpu.vector_store %arg3[%c0_8, %c0_9], %19 {strides = array<i32>} : memref<8x512xf32, #tpu.memory_space<vmem>>, vector<8x512xf32>,
    } else {
    }
    %c0_i32_5 = arith.constant 0 : i32
    %15 = arith.cmpi eq, %arg0, %c0_i32_5 : i32
    %16 = arith.extui %15 : i1 to i32
    %c0_i32_6 = arith.constant 0 : i32
    %17 = arith.cmpi ne, %16, %c0_i32_6 : i32
    scf.if %17 {
      %c8_i32 = arith.constant 8 : i32
      %18 = arith.muli %arg0, %c8_i32 : i32
      %19 = tpu.iota {dimensions = array<i32: 0>} : vector<8x512xi32>
      %20 = vector.broadcast %18 : i32 to vector<8x512xi32>
      %21 = arith.addi %20, %19 : vector<8x512xi32>
      %c4_i32 = arith.constant 4 : i32
      %22 = vector.broadcast %c4_i32 : i32 to vector<8x512xi32>
      %23 = arith.cmpi slt, %21, %22 : vector<8x512xi32>
      %cst_7 = arith.constant 0.000000e+00 : f32
      %24 = vector.broadcast %cst_7 : f32 to vector<8x512xf32>
      %25 = arith.select %23, %11, %24 : vector<8x512xi1>, vector<8x512xf32>
      %26 = vector.shape_cast %25 : vector<8x512xf32> to vector<1x8x512xf32>
      %cst_8 = arith.constant dense<0.000000e+00> : vector<8x512xf32>
      %27 = vector.multi_reduction <add>, %26, %cst_8 [0] : vector<1x8x512xf32> to vector<8x512xf32>
      %c0_9 = arith.constant 0 : index
      %c0_10 = arith.constant 0 : index
      %28 = vector.load %arg3[%c0_9, %c0_10] : memref<8x512xf32, #tpu.memory_space<vmem>>, vector<8x512xf32>
      tpu.vector_store %arg3[%c0_9, %c0_10], %27 {strides = array<i32>} : memref<8x512xf32, #tpu.memory_space<vmem>>, vector<8x512xf32>,
    } else {
    }
    return
  }
  func.func @transform_0(%arg0: i32) -> (i32, i32) {
    %c0_i32 = arith.constant 0 : i32
    %c0_i32_0 = arith.constant 0 : i32
    return %arg0, %c0_i32 : i32, i32
  }
  func.func @transform_1(%arg0: i32) -> (i32, i32) {
    %c0_i32 = arith.constant 0 : i32
    %c0_i32_0 = arith.constant 0 : i32
    return %arg0, %c0_i32 : i32, i32
  }
  func.func @transform_2(%arg0: i32) -> (i32, i32) {
    %c0_i32 = arith.constant 0 : i32
    %c0_i32_0 = arith.constant 0 : i32
    return %arg0, %c0_i32 : i32, i32
  }
}

</mosaic_0001>

<llo_original>
// kernel: tpu_custom_call.1
$region0: #{tpu_custom_call.1}
  #allocation0 [shape = 'u32[]', space=smem, size = 0x4, offset = 0x4, fixed_abs, tag = 'smem constant byte address 0x4 - core index']
  #allocation1 [shape = 'u32[72,128]{1,0:T(1,128)}', space=vmem, size = 0x9000, scoped, tag = 'internal scratch']
  %s0 = inlined_call_operand.hbm [shape: f32[4,512], index: 0, kind: input, shape index: {}]
  %s1 = inlined_call_operand.hbm [shape: f32[4,512], index: 1, kind: input, shape index: {}]
  %s2 = inlined_call_operand.hbm [shape: f32[8,512], index: 2, kind: output, shape index: {}]
  %s3 = sld [smem:[#allocation0]]
  $region34: #{tpu_custom_call.1} parent=0
    _
  %s5 = ssub.s32 1, %s3
  %s6 = scalar_select 0, %s5, %s3
  $region1: #{tpu_custom_call.1} parent=0
    #allocation2 [shape = 'u8[16384]{0}', space=vmem, size = 0x4000, scoped, tag = 'input window, operand 0, single buffered']
    #allocation3 [shape = 's32[1]{0}', space=sflag, size = 0x4, scoped, tag = 'scoped memory for tpu_custom_call.1']
    #allocation4 [shape = 's32[1]{0}', space=sflag, size = 0x4, scoped, tag = 'scoped memory for tpu_custom_call.1']
    #allocation5 [shape = 'u8[16384]{0}', space=vmem, size = 0x4000, scoped, tag = 'input window, operand 1, single buffered']
    #allocation6 [shape = 's32[1]{0}', space=sflag, size = 0x4, scoped, tag = 'scoped memory for tpu_custom_call.1']
    #allocation7 [shape = 'u8[16384]{0}', space=vmem, size = 0x4000, scoped, tag = 'output window, operand 0, single buffered']
    %7 = vsyncpa [#allocation3], 0
    %8 = vsyncpa [#allocation6], 0
    %9 = vsyncpa [#allocation4], 0
    // Predicated region
    $region2: #{tpu_custom_call.1} parent=1 // pred_check
      _
    $region3: #{tpu_custom_call.1} parent=1 // pred_check_branch
      %11 = sbr.rel (0) target = $region5
    $region4: #{tpu_custom_call.1} parent=1 // pred_region
      %13 = vsyncadd [#allocation3], 256
      %s14 = sshll.u32 %s0, 4
      %s15 = int_to_ptr.hbm [resolvable:$true] %s14
      %s16 = sshll.u32 [#allocation2], 4
      %s17 = int_to_ptr.vmem [resolvable:$true] %s16
      %22 = dma.hbm_to_vmem [thread:$0]  %s15, 256, %s17, [#allocation3], 256, 256, 16
    $region5: #{tpu_custom_call.1} parent=1 // pred_fallthru
      _
    // Predicated region
    $region6: #{tpu_custom_call.1} parent=1 // pred_check
      _
    $region7: #{tpu_custom_call.1} parent=1 // pred_check_branch
      %24 = sbr.rel (0) target = $region9
    $region8: #{tpu_custom_call.1} parent=1 // pred_region
      %26 = vsyncadd [#allocation6], 256
      %s27 = sshll.u32 %s1, 4
      %s28 = int_to_ptr.hbm [resolvable:$true] %s27
      %s29 = sshll.u32 [#allocation5], 4
      %s30 = int_to_ptr.vmem [resolvable:$true] %s29
      %35 = dma.hbm_to_vmem [thread:$0]  %s28, 256, %s30, [#allocation6], 256, 256, 16
    $region9: #{tpu_custom_call.1} parent=1 // pred_fallthru
      _
    // Predicated region
    $region10: #{tpu_custom_call.1} parent=1 // pred_check
      _
    $region11: #{tpu_custom_call.1} parent=1 // pred_check_branch
      %37 = sbr.rel (0) target = $region13
    $region12: #{tpu_custom_call.1} parent=1 // pred_region
      %39 = dma.done [#allocation3], 512
    $region13: #{tpu_custom_call.1} parent=1 // pred_fallthru
      _
    // Predicated region
    $region14: #{tpu_custom_call.1} parent=1 // pred_check
      _
    $region15: #{tpu_custom_call.1} parent=1 // pred_check_branch
      %41 = sbr.rel (0) target = $region17
    $region16: #{tpu_custom_call.1} parent=1 // pred_region
      %43 = dma.done [#allocation6], 512
    $region17: #{tpu_custom_call.1} parent=1 // pred_fallthru
      _
    %v44 = vld [vmem:[#allocation2] sm:$0xff]
    %v45 = vld [vmem:[#allocation2 + $0x8] sm:$0xff]
    %v46 = vld [vmem:[#allocation2 + $0x10] sm:$0xff]
    %v47 = vld [vmem:[#allocation2 + $0x18] sm:$0xff]
    %v48 = vld [vmem:[#allocation5] sm:$0xff]
    %v49 = vld [vmem:[#allocation5 + $0x8] sm:$0xff]
    %v50 = vld [vmem:[#allocation5 + $0x10] sm:$0xff]
    %v51 = vld [vmem:[#allocation5 + $0x18] sm:$0xff]
    %v52 = vmax.f32 %v44, 0.0
    %v53 = vmax.f32 %v45, 0.0
    %v54 = vmax.f32 %v46, 0.0
    %v55 = vmax.f32 %v47, 0.0
    %v56 = vmul.f32 %v44, %v48
    %v57 = vmul.f32 %v45, %v49
    %v58 = vmul.f32 %v46, %v50
    %v59 = vmul.f32 %v47, %v51
    %v60 = vsub.f32 %v52, %v56
    %v61 = vsub.f32 %v53, %v57
    %v62 = vsub.f32 %v54, %v58
    %v63 = vsub.f32 %v55, %v59
    %v64 = vand.u32 2147483647, %v44
    %v65 = vand.u32 2147483647, %v45
    %v66 = vand.u32 2147483647, %v46
    %v67 = vand.u32 2147483647, %v47
    %v68 = vsub.f32 0.0, %v64
    %v69 = vsub.f32 0.0, %v65
    %v70 = vsub.f32 0.0, %v66
    %v71 = vsub.f32 0.0, %v67
    %v72 = vmul.f32 %v68, 1.442695
    %v73 = vpow.pop %v72
    %v74 = vmul.f32 %v69, 1.442695
    %v75 = vpow.pop %v74
    %v76 = vmul.f32 %v70, 1.442695
    %v77 = vpow.pop %v76
    %v78 = vmul.f32 %v71, 1.442695
    %v79 = vpow.pop %v78
    %v80 = vadd.f32 %v73, 1.0
    %v81 = vlog2.pop %v80
    %v82 = vmul.f32 %v81, 0.6931472
    %v83 = vmul.f32 -0.5, %v73
    %v84 = vadd.f32 %v83, 1.0
    %v85 = vmul.f32 %v84, %v73
    %v86 = vand.u32 2147483647, %v73
    %vm87 = vcmp.lt.f32.partialorder %v86, 0.0004427343
    %v88 = vsel %vm87, %v85, %v82
    %v89 = vadd.f32 %v75, 1.0
    %v90 = vlog2.pop %v89
    %v91 = vmul.f32 %v90, 0.6931472
    %v92 = vmul.f32 -0.5, %v75
    %v93 = vadd.f32 %v92, 1.0
    %v94 = vmul.f32 %v93, %v75
    %v95 = vand.u32 2147483647, %v75
    %vm96 = vcmp.lt.f32.partialorder %v95, 0.0004427343
    %v97 = vsel %vm96, %v94, %v91
    %v98 = vadd.f32 %v77, 1.0
    %v99 = vlog2.pop %v98
    %v100 = vmul.f32 %v99, 0.6931472
    %v101 = vmul.f32 -0.5, %v77
    %v102 = vadd.f32 %v101, 1.0
    %v103 = vmul.f32 %v102, %v77
    %v104 = vand.u32 2147483647, %v77
    %vm105 = vcmp.lt.f32.partialorder %v104, 0.0004427343
    %v106 = vsel %vm105, %v103, %v100
    %v107 = vadd.f32 %v79, 1.0
    %v108 = vlog2.pop %v107
    %v109 = vmul.f32 %v108, 0.6931472
    %v110 = vmul.f32 -0.5, %v79
    %v111 = vadd.f32 %v110, 1.0
    %v112 = vmul.f32 %v111, %v79
    %v113 = vand.u32 2147483647, %v79
    %vm114 = vcmp.lt.f32.partialorder %v113, 0.0004427343
    %v115 = vsel %vm114, %v112, %v109
    %v116 = vadd.f32 %v60, %v88
    %v117 = vadd.f32 %v61, %v97
    %v118 = vadd.f32 %v62, %v106
    %v119 = vadd.f32 %v63, %v115
    %p120 = scmp.ne.s32.totalorder 0, 0
    // Predicated region
    $region18: #{tpu_custom_call.1} parent=1 // pred_check
      %p121 = pneg %p120
    $region19: #{tpu_custom_call.1} parent=1 // pred_check_branch
      %123 = sbr.rel (%p121) target = $region21
    $region20: #{tpu_custom_call.1} parent=1 // pred_region
      %v124 = vadd.f32 %v116, 0.0
      %v125 = vadd.f32 %v117, 0.0
      %v126 = vadd.f32 %v118, 0.0
      %v127 = vadd.f32 %v119, 0.0
      %132 = vst [vmem:[#allocation1] ss:$2 sm:$0xff] %v124
      %s133 = scalar_lea.vmem [#allocation1], 1
      %134 = vst [vmem:[%s133] ss:$2 sm:$0xff] %v126
      %s135 = scalar_lea.vmem [#allocation1], 16
      %136 = vst [vmem:[%s135] ss:$2 sm:$0xff] %v125
      %s137 = scalar_lea.vmem [#allocation1], 17
      %138 = vst [vmem:[%s137] ss:$2 sm:$0xff] %v127
      %v139 = vld.sshfl [vmem:[#allocation1] sm:$0xff pattern:$0x75316420]
      %v140 = vld.sshfl [vmem:[#allocation1 + $0x8] sm:$0xff pattern:$0x75316420]
      %v141 = vld.sshfl [vmem:[#allocation1 + $0x10] sm:$0xff pattern:$0x75316420]
      %v142 = vld.sshfl [vmem:[#allocation1 + $0x18] sm:$0xff pattern:$0x75316420]
      %147 = vst [vmem:[#allocation7] sm:$0xff] %v139
      %148 = vst [vmem:[#allocation7 + $0x8] sm:$0xff] %v140
      %149 = vst [vmem:[#allocation7 + $0x10] sm:$0xff] %v141
      %150 = vst [vmem:[#allocation7 + $0x18] sm:$0xff] %v142
    $region21: #{tpu_custom_call.1} parent=1 // pred_fallthru
      _
    %p151 = scmp.eq.s32.totalorder 0, 0
    // Predicated region
    $region22: #{tpu_custom_call.1} parent=1 // pred_check
      %p152 = pneg %p151
    $region23: #{tpu_custom_call.1} parent=1 // pred_check_branch
      %154 = sbr.rel (%p152) target = $region25
    $region24: #{tpu_custom_call.1} parent=1 // pred_region
      %s155 = smul.u32 0, 8
      %v156 = vlaneseq
      %v157 = vshrl.u32 %v156, 7
      %v158 = vstv %s155
      %v159 = vadd.s32 %v158, %v157
      %vm160 = vcmp.lt.s32.totalorder %v159, 4
      %165 = vst [vmem:[#allocation1] ss:$2 sm:$0xff] %v116
      %s166 = scalar_lea.vmem [#allocation1], 1
      %167 = vst [vmem:[%s166] ss:$2 sm:$0xff] %v118
      %s168 = scalar_lea.vmem [#allocation1], 16
      %169 = vst [vmem:[%s168] ss:$2 sm:$0xff] %v117
      %s170 = scalar_lea.vmem [#allocation1], 17
      %171 = vst [vmem:[%s170] ss:$2 sm:$0xff] %v119
      %v172 = vld.sshfl [vmem:[#allocation1] sm:$0xff pattern:$0x75316420]
      %v173 = vld.sshfl [vmem:[#allocation1 + $0x8] sm:$0xff pattern:$0x75316420]
      %v174 = vld.sshfl [vmem:[#allocation1 + $0x10] sm:$0xff pattern:$0x75316420]
      %v175 = vld.sshfl [vmem:[#allocation1 + $0x18] sm:$0xff pattern:$0x75316420]
      %v180 = vsel %vm160, %v172, 0.0
      %v181 = vsel %vm160, %v173, 0.0
      %v182 = vsel %vm160, %v174, 0.0
      %v183 = vsel %vm160, %v175, 0.0
      %v184 = vadd.f32 %v180, 0.0
      %v185 = vadd.f32 %v181, 0.0
      %v186 = vadd.f32 %v182, 0.0
      %v187 = vadd.f32 %v183, 0.0
      %188 = vst [vmem:[#allocation7] sm:$0xff] %v184
      %189 = vst [vmem:[#allocation7 + $0x8] sm:$0xff] %v185
      %190 = vst [vmem:[#allocation7 + $0x10] sm:$0xff] %v186
      %191 = vst [vmem:[#allocation7 + $0x18] sm:$0xff] %v187
    $region25: #{tpu_custom_call.1} parent=1 // pred_fallthru
      _
    // Predicated region
    $region26: #{tpu_custom_call.1} parent=1 // pred_check
      _
    $region27: #{tpu_custom_call.1} parent=1 // pred_check_branch
      %193 = sbr.rel (0) target = $region29
    $region28: #{tpu_custom_call.1} parent=1 // pred_region
      %195 = vsyncadd [#allocation4], 0
      %s197 = sshll.u32 [#allocation7], 4
      %s198 = int_to_ptr.vmem [resolvable:$true] %s197
      %s199 = sshll.u32 %s2, 4
      %s200 = int_to_ptr.hbm [resolvable:$true] %s199
      %202 = dma.vmem_to_hbm [thread:$0]  %s198, 512, %s200, [#allocation4]
    $region29: #{tpu_custom_call.1} parent=1 // pred_fallthru
      _
    // Predicated region
    $region30: #{tpu_custom_call.1} parent=1 // pred_check
      _
    $region31: #{tpu_custom_call.1} parent=1 // pred_check_branch
      %204 = sbr.rel (0) target = $region33
    $region32: #{tpu_custom_call.1} parent=1 // pred_region
      %206 = dma.done [#allocation4], 512
    $region33: #{tpu_custom_call.1} parent=1 // pred_fallthru
      _
    %207 = vsyncpa [#allocation3], 1
    %208 = vsyncpa [#allocation6], 1
    %209 = vsyncpa [#allocation4], 1

</llo_original>
